<compile_context>
chip_gen: v5e
topology: v5e:2x2
jax: 0.10.0
libtpu: 0.0.40
codegen_flags: <defaults>
</compile_context>

<pallas_src>
import jax
import jax.numpy as jnp
from jax.experimental import pallas as pl
from jax.experimental.pallas import tpu as pltpu


def _hyperspectral_kernel(x_ref, w1_ref, b1_ref, w2_ref, b2_ref, o_ref):
    # x_ref : (B_TILE, C)  bf16   (channel slice of sub-model k, batch tile b)
    # w1_ref: (C, H)       bf16   (leading model axis squeezed away)
    # b1_ref: (1, H)       f32
    # w2_ref: (H, D)       bf16
    # b2_ref: (1, D)       f32
    # o_ref : (B_TILE, D)  f32    (slice k*D:(k+1)*D of the concatenated out)
    x = x_ref[...]
    w1 = w1_ref[...]
    w2 = w2_ref[...]

    h = jnp.dot(x, w1, preferred_element_type=jnp.float32) + b1_ref[...]
    h = jnp.maximum(h, 0.0)                                   # ReLU in f32 (VPU)
    z = jnp.dot(h.astype(jnp.bfloat16), w2,
                preferred_element_type=jnp.float32) + b2_ref[...]
    o_ref[...] = z.astype(o_ref.dtype)


def hyperspectral_forward(x, w1, b1, w2, b2, *, b_tile=None):
    """
    x  : (B, K*C)  float32  -- flat spectral input, channels-last (native layout)
    w1 : (K, C, H) float32
    b1 : (K, 1, H) float32
    w2 : (K, H, D) float32
    b2 : (K, 1, D) float32
    returns (B, K*D) float32 == concat of per-model outputs along axis=1,
    in dict (model) order, exactly like the PyTorch wrapper.
    """
    K, C, H = w1.shape
    D = w2.shape[-1]
    B = x.shape[0]
    assert x.shape[1] == K * C, (x.shape, K, C)
    # Lane / sublane alignment (see header TODOs for the unaligned case).
    assert C % 128 == 0 and H % 128 == 0 and D % 128 == 0, (C, H, D)

    if b_tile is None:
        b_tile = min(B, 256)          # modest default; weights+tiles stay far
                                      # under the v7x 64 MiB VMEM budget.
    assert B % b_tile == 0 and b_tile % 8 == 0, (B, b_tile)

    # bf16 operands for the MXU, f32 accumulation inside the kernel.
    x_bf = x.astype(jnp.bfloat16)
    w1_bf = w1.astype(jnp.bfloat16)
    w2_bf = w2.astype(jnp.bfloat16)
    b1_f = b1.astype(jnp.float32)
    b2_f = b2.astype(jnp.float32)

    # Grid: k outer, batch-tile inner -> weight block index is unchanged
    # between consecutive steps, so Pallas skips the weight re-DMA and only
    # streams activation tiles.
    grid = (K, B // b_tile)

    out = pl.pallas_call(
        _hyperspectral_kernel,
        out_shape=jax.ShapeDtypeStruct((B, K * D), jnp.float32),
        grid_spec=pltpu.PrefetchScalarGridSpec(
            num_scalar_prefetch=0,
            grid=grid,
            in_specs=[
                # Channel slice k, batch tile b, read straight from (B, K*C).
                pl.BlockSpec((b_tile, C), lambda k, b: (b, k)),
                # Per-model weights/biases: resident across the inner b axis.
                pl.BlockSpec((pl.Squeezed(), C, H), lambda k, b: (k, 0, 0)),
                pl.BlockSpec((pl.Squeezed(), 1, H), lambda k, b: (k, 0, 0)),
                pl.BlockSpec((pl.Squeezed(), H, D), lambda k, b: (k, 0, 0)),
                pl.BlockSpec((pl.Squeezed(), 1, D), lambda k, b: (k, 0, 0)),
            ],
            # Lane-dense (D = multiple of 128) block written straight into the
            # native concatenated (B, K*D) output -> no wrapper transpose.
            out_specs=pl.BlockSpec((b_tile, D), lambda k, b: (b, k)),
        ),
        compiler_params=pltpu.CompilerParams(
            dimension_semantics=("parallel", "parallel")),
    )(x_bf, w1_bf, b1_f, w2_bf, b2_f)

    return out


def _reference_forward(x, w1, b1, w2, b2):
    """Pure-JAX reference mirroring the PyTorch loop (same bf16/f32 policy)."""
    K, C, _ = w1.shape
    x_bf = x.astype(jnp.bfloat16)
    w1_bf = w1.astype(jnp.bfloat16)
    w2_bf = w2.astype(jnp.bfloat16)
    zs = []
    off = 0
    for k in range(K):
        xs = x_bf[:, off:off + C]
        h = jnp.dot(xs, w1_bf[k], preferred_element_type=jnp.float32) + b1[k]
        h = jnp.maximum(h, 0.0)
        z = jnp.dot(h.astype(jnp.bfloat16), w2_bf[k],
                    preferred_element_type=jnp.float32) + b2[k]
        zs.append(z)
        off += C
    return jnp.concatenate(zs, axis=1)


if __name__ == "__main__":
    # Small but hardware-aligned shapes: 3 spectral-domain sub-models, each
    # taking C=128 channels, hidden 128, output 128, batch 16 (2 batch tiles).
    B, K, C, H, D = 16, 3, 128, 128, 128
    B_TILE = 8

    key = jax.random.PRNGKey(0)
    kx, kw1, kb1, kw2, kb2 = jax.random.split(key, 5)

    x = jax.random.normal(kx, (B, K * C), dtype=jnp.float32)
    w1 = jax.random.normal(kw1, (K, C, H), dtype=jnp.float32) * 0.1
    b1 = jax.random.normal(kb1, (K, 1, H), dtype=jnp.float32) * 0.1
    w2 = jax.random.normal(kw2, (K, H, D), dtype=jnp.float32) * 0.1
    b2 = jax.random.normal(kb2, (K, 1, D), dtype=jnp.float32) * 0.1

    out = hyperspectral_forward(x, w1, b1, w2, b2, b_tile=B_TILE)
    out = jax.block_until_ready(out)

    ref = _reference_forward(x, w1, b1, w2, b2)
    assert out.shape == (B, K * D), out.shape
    assert jnp.allclose(out, ref, atol=2e-2, rtol=2e-2), "mismatch vs reference"

    print("KERNEL_OK")
</pallas_src>

<mosaic_0001>
module attributes {stable_mosaic.version = 11 : i64} {
  func.func @_hyperspectral_kernel(%arg0: i32, %arg1: i32, %arg2: memref<8x128xbf16, #tpu.memory_space<vmem>>, %arg3: memref<1x128x128xbf16, #tpu.memory_space<vmem>>, %arg4: memref<1x1x128xf32, #tpu.memory_space<vmem>>, %arg5: memref<1x128x128xbf16, #tpu.memory_space<vmem>>, %arg6: memref<1x1x128xf32, #tpu.memory_space<vmem>>, %arg7: memref<8x128xf32, #tpu.memory_space<vmem>>) attributes {dimension_semantics = [#tpu.dimension_semantics<parallel>, #tpu.dimension_semantics<parallel>], iteration_bounds = array<i64: 3, 2>, scalar_prefetch = 0 : i64, scratch_operands = 0 : i64, tpu.core_type = #tpu.core_type<tc>, window_params = [{transform_indices = @transform_0, window_bounds = array<i64: 8, 128>}, {transform_indices = @transform_1, window_bounds = array<i64: 1, 128, 128>}, {transform_indices = @transform_2, window_bounds = array<i64: 1, 1, 128>}, {transform_indices = @transform_3, window_bounds = array<i64: 1, 128, 128>}, {transform_indices = @transform_4, window_bounds = array<i64: 1, 1, 128>}, {transform_indices = @transform_5, window_bounds = array<i64: 8, 128>}]} {
    %c0 = arith.constant 0 : index
    %c0_0 = arith.constant 0 : index
    %0 = vector.load %arg2[%c0, %c0_0] : memref<8x128xbf16, #tpu.memory_space<vmem>>, vector<8x128xbf16>
    %c0_1 = arith.constant 0 : index
    %c0_2 = arith.constant 0 : index
    %c0_3 = arith.constant 0 : index
    %1 = vector.load %arg3[%c0_1, %c0_2, %c0_3] : memref<1x128x128xbf16, #tpu.memory_space<vmem>>, vector<1x128x128xbf16>
    %2 = vector.shape_cast %1 : vector<1x128x128xbf16> to vector<128x128xbf16>
    %c0_4 = arith.constant 0 : index
    %c0_5 = arith.constant 0 : index
    %c0_6 = arith.constant 0 : index
    %3 = vector.load %arg5[%c0_4, %c0_5, %c0_6] : memref<1x128x128xbf16, #tpu.memory_space<vmem>>, vector<1x128x128xbf16>
    %4 = vector.shape_cast %3 : vector<1x128x128xbf16> to vector<128x128xbf16>
    %cst = arith.constant dense<0.000000e+00> : vector<8x128xf32>
    %5 = tpu.matmul %0, %2, %cst {dimension_numbers = #tpu.dot_dimension_numbers<[1], [0], [0], [1], [0, 0, 1, 1], [], []>} : vector<8x128xbf16>, vector<128x128xbf16>, vector<8x128xf32> -> vector<8x128xf32>
    %c0_7 = arith.constant 0 : index
    %c0_8 = arith.constant 0 : index
    %c0_9 = arith.constant 0 : index
    %6 = vector.load %arg4[%c0_7, %c0_8, %c0_9] : memref<1x1x128xf32, #tpu.memory_space<vmem>>, vector<1x1x128xf32>
    %7 = vector.shape_cast %6 : vector<1x1x128xf32> to vector<1x128xf32>
    %8 = vector.broadcast %7 : vector<1x128xf32> to vector<8x128xf32>
    %9 = arith.addf %5, %8 : vector<8x128xf32>
    %cst_10 = arith.constant 0.000000e+00 : f32
    %10 = vector.broadcast %cst_10 : f32 to vector<8x128xf32>
    %11 = arith.maximumf %9, %10 : vector<8x128xf32>
    %12 = arith.truncf %11 : vector<8x128xf32> to vector<8x128xbf16>
    %cst_11 = arith.constant dense<0.000000e+00> : vector<8x128xf32>
    %13 = tpu.matmul %12, %4, %cst_11 {dimension_numbers = #tpu.dot_dimension_numbers<[1], [0], [0], [1], [0, 0, 1, 1], [], []>} : vector<8x128xbf16>, vector<128x128xbf16>, vector<8x128xf32> -> vector<8x128xf32>
    %c0_12 = arith.constant 0 : index
    %c0_13 = arith.constant 0 : index
    %c0_14 = arith.constant 0 : index
    %14 = vector.load %arg6[%c0_12, %c0_13, %c0_14] : memref<1x1x128xf32, #tpu.memory_space<vmem>>, vector<1x1x128xf32>
    %15 = vector.shape_cast %14 : vector<1x1x128xf32> to vector<1x128xf32>
    %16 = vector.broadcast %15 : vector<1x128xf32> to vector<8x128xf32>
    %17 = arith.addf %13, %16 : vector<8x128xf32>
    %c0_15 = arith.constant 0 : index
    %c0_16 = arith.constant 0 : index
    %18 = vector.load %arg7[%c0_15, %c0_16] : memref<8x128xf32, #tpu.memory_space<vmem>>, vector<8x128xf32>
    tpu.vector_store %arg7[%c0_15, %c0_16], %17 {strides = array<i32>} : memref<8x128xf32, #tpu.memory_space<vmem>>, vector<8x128xf32>,
    return
  }
  func.func @transform_0(%arg0: i32, %arg1: i32) -> (i32, i32) {
    %c0_i32 = arith.constant 0 : i32
    return %arg1, %arg0 : i32, i32
  }
  func.func @transform_1(%arg0: i32, %arg1: i32) -> (i32, i32, i32) {
    %c0_i32 = arith.constant 0 : i32
    %c0_i32_0 = arith.constant 0 : i32
    %c0_i32_1 = arith.constant 0 : i32
    return %arg0, %c0_i32, %c0_i32_0 : i32, i32, i32
  }
  func.func @transform_2(%arg0: i32, %arg1: i32) -> (i32, i32, i32) {
    %c0_i32 = arith.constant 0 : i32
    %c0_i32_0 = arith.constant 0 : i32
    %c0_i32_1 = arith.constant 0 : i32
    return %arg0, %c0_i32, %c0_i32_0 : i32, i32, i32
  }
  func.func @transform_3(%arg0: i32, %arg1: i32) -> (i32, i32, i32) {
    %c0_i32 = arith.constant 0 : i32
    %c0_i32_0 = arith.constant 0 : i32
    %c0_i32_1 = arith.constant 0 : i32
    return %arg0, %c0_i32, %c0_i32_0 : i32, i32, i32
  }
  func.func @transform_4(%arg0: i32, %arg1: i32) -> (i32, i32, i32) {
    %c0_i32 = arith.constant 0 : i32
    %c0_i32_0 = arith.constant 0 : i32
    %c0_i32_1 = arith.constant 0 : i32
    return %arg0, %c0_i32, %c0_i32_0 : i32, i32, i32
  }
  func.func @transform_5(%arg0: i32, %arg1: i32) -> (i32, i32) {
    %c0_i32 = arith.constant 0 : i32
    return %arg1, %arg0 : i32, i32
  }
}

</mosaic_0001>

<llo_original>
// kernel: tpu_custom_call.1
$region0: #{tpu_custom_call.1}
  #allocation0 [shape = 'u32[]', space=smem, size = 0x4, offset = 0x4, fixed_abs, tag = 'smem constant byte address 0x4 - core index']
  #allocation1 [shape = 'u32[72,128]{1,0:T(1,128)}', space=vmem, size = 0x9000, scoped, tag = 'internal scratch']
  %s0 = inlined_call_operand.hbm [shape: bf16[16,384], index: 0, kind: input, shape index: {}]
  %s1 = inlined_call_operand.hbm [shape: bf16[3,128,128], index: 1, kind: input, shape index: {}]
  %s2 = inlined_call_operand.hbm [shape: f32[3,1,128], index: 2, kind: input, shape index: {}]
  %s3 = inlined_call_operand.hbm [shape: bf16[3,128,128], index: 3, kind: input, shape index: {}]
  %s4 = inlined_call_operand.vmem [shape: f32[3,1,128], index: 4, kind: input, shape index: {}]
  %s5 = inlined_call_operand.hbm [shape: f32[16,384], index: 5, kind: output, shape index: {}]
  %s6 = sld [smem:[#allocation0]]
  $region69: #{tpu_custom_call.1} parent=0
    _
  %s8 = ssub.s32 1, %s6
  %s9 = scalar_select 0, %s8, %s6
  $region1: #{tpu_custom_call.1} parent=0
    #allocation2 [shape = 'u8[4096]{0}', space=vmem, size = 0x1000, scoped, tag = 'input window, operand 0']
    #allocation3 [shape = 's32[2]{0}', space=sflag, size = 0x8, scoped, tag = 'scoped memory for tpu_custom_call.1']
    #allocation4 [shape = 's32[2]{0}', space=sflag, size = 0x8, scoped, tag = 'scoped memory for tpu_custom_call.1']
    #allocation5 [shape = 'u8[65536]{0}', space=vmem, size = 0x10000, scoped, tag = 'input window, operand 1']
    #allocation6 [shape = 's32[2]{0}', space=sflag, size = 0x8, scoped, tag = 'scoped memory for tpu_custom_call.1']
    #allocation7 [shape = 'u8[1024]{0}', space=vmem, size = 0x400, scoped, tag = 'input window, operand 2']
    #allocation8 [shape = 'u8[65536]{0}', space=vmem, size = 0x10000, scoped, tag = 'input window, operand 3']
    #allocation9 [shape = 's32[2]{0}', space=sflag, size = 0x8, scoped, tag = 'scoped memory for tpu_custom_call.1']
    #allocation10 [shape = 'u8[8192]{0}', space=vmem, size = 0x2000, scoped, tag = 'output window, operand 0']
    %10 = vsyncpa [#allocation3], 0
    %s11 = scalar_lea.sflag [#allocation3], 1
    %12 = vsyncpa %s11, 0
    %13 = vsyncpa [#allocation6], 0
    %s14 = scalar_lea.sflag [#allocation6], 1
    %15 = vsyncpa %s14, 0
    %16 = vsyncpa [#allocation9], 0
    %s17 = scalar_lea.sflag [#allocation9], 1
    %18 = vsyncpa %s17, 0
    %19 = vsyncpa [#allocation4], 0
    %s20 = scalar_lea.sflag [#allocation4], 1
    %21 = vsyncpa %s20, 0
    loop: start=0, step=1, limit=8
    $region2: #{tpu_custom_call.1} parent=1 // loop_pre_header
      _
    $region3: #{tpu_custom_call.1} parent=1 // loop_header
      %s23 = sphi 0, %s27
      %p24 = scmp.ge.s32.totalorder %s23, 8
      %s30 = sphi 0, %s42
      %s31 = sphi 0, %s38
      %s32 = sphi 0, %s30
      %s33 = sphi 0, %s31
      %s34 = sphi 0, %s32
      %s35 = sphi 0, %s33
      %s47 = sphi 0, %s49
      %s50 = sphi 0, %s47
      %s51 = sphi 0, %s50
      %s67 = sphi 0, %s51
      %s73 = sphi 0, %s75
      %s76 = sphi 0, %s73
      %s77 = sphi 0, %s76
      %s93 = sphi 0, %s77
      %s99 = sphi 0, %s101
      %s102 = sphi 0, %s99
      %s103 = sphi 0, %s102
      %s119 = sphi 0, %s103
      %s125 = sphi 0, %s127
      %s128 = sphi 0, %s125
      %s129 = sphi 0, %s128
      %s145 = sphi 0, %s129
      %s151 = sphi 0, %s153
      %s154 = sphi 0, %s151
      %s155 = sphi 0, %s154
      %s171 = sphi 0, %s155
      %s179 = sphi 0, %s181
      %s182 = sphi 0, %s179
      %s183 = sphi 0, %s182
      %s199 = sphi 0, %s183
    $region4: #{tpu_custom_call.1} parent=1 // loop_header_branch
      %26 = sbr.rel (%p24) target = $region8
    $region5: #{tpu_custom_call.1} parent=1 // loop_body
      %s28 = ssub.s32 %s23, 1
      %s29 = ssub.s32 %s23, 2
      %s36 = sadd.s32 1, %s31
      %p37 = scmp.ge.s32.totalorder %s36, 2
      %s38 = scalar_select %p37, 0, %s36
      %s39 = sadd.s32 1, %s30
      %s40 = scalar_select %p37, %s39, %s30
      %p41 = scmp.ge.s32.totalorder %s40, 3
      %s42 = scalar_select %p41, 0, %s40
      %s43 = ssub.s32 %s31, %s38
      %s44 = ssub.s32 %s30, %s42
      %s45 = sor.u32 %s43, %s44
      %p46 = scmp.eq.s32.totalorder %s45, 0
      %s48 = sadd.s32 %s47, 1
      %s49 = scalar_select %p46, %s47, %s48
      %p52 = pneg %p46
      %p53 = scmp.eq.s32.totalorder %s23, 5
      %p54 = por %p52, %p53
      %p55 = scmp.ne.s32.totalorder %s47, %s50
      %p56 = scmp.eq.s32.totalorder %s23, 0
      %p57 = por %p55, %p56
      %p58 = scmp.ne.s32.totalorder %s47, %s50
      %p59 = scmp.eq.s32.totalorder %s28, 5
      %p60 = por %p58, %p59
      %p61 = scmp.ne.s32.totalorder %s50, %s51
      %p62 = scmp.eq.s32.totalorder %s28, 0
      %p63 = por %p61, %p62
      %p64 = scmp.ne.s32.totalorder %s50, %s51
      %p65 = scmp.eq.s32.totalorder %s29, 5
      %p66 = por %p64, %p65
      %p68 = scmp.ne.s32.totalorder %s51, %s67
      %p69 = scmp.eq.s32.totalorder %s29, 0
      %p70 = por %p68, %p69
      %s71 = ssub.s32 %s30, %s42
      %p72 = scmp.eq.s32.totalorder %s71, 0
      %s74 = sadd.s32 %s73, 1
      %s75 = scalar_select %p72, %s73, %s74
      %p78 = pneg %p72
      %p79 = scmp.eq.s32.totalorder %s23, 5
      %p80 = por %p78, %p79
      %p81 = scmp.ne.s32.totalorder %s73, %s76
      %p82 = scmp.eq.s32.totalorder %s23, 0
      %p83 = por %p81, %p82
      %p84 = scmp.ne.s32.totalorder %s73, %s76
      %p85 = scmp.eq.s32.totalorder %s28, 5
      %p86 = por %p84, %p85
      %p87 = scmp.ne.s32.totalorder %s76, %s77
      %p88 = scmp.eq.s32.totalorder %s28, 0
      %p89 = por %p87, %p88
      %p90 = scmp.ne.s32.totalorder %s76, %s77
      %p91 = scmp.eq.s32.totalorder %s29, 5
      %p92 = por %p90, %p91
      %p94 = scmp.ne.s32.totalorder %s77, %s93
      %p95 = scmp.eq.s32.totalorder %s29, 0
      %p96 = por %p94, %p95
      %s97 = ssub.s32 %s30, %s42
      %p98 = scmp.eq.s32.totalorder %s97, 0
      %s100 = sadd.s32 %s99, 1
      %s101 = scalar_select %p98, %s99, %s100
      %p104 = pneg %p98
      %p105 = scmp.eq.s32.totalorder %s23, 5
      %p106 = por %p104, %p105
      %p107 = scmp.ne.s32.totalorder %s99, %s102
      %p108 = scmp.eq.s32.totalorder %s23, 0
      %p109 = por %p107, %p108
      %p110 = scmp.ne.s32.totalorder %s99, %s102
      %p111 = scmp.eq.s32.totalorder %s28, 5
      %p112 = por %p110, %p111
      %p113 = scmp.ne.s32.totalorder %s102, %s103
      %p114 = scmp.eq.s32.totalorder %s28, 0
      %p115 = por %p113, %p114
      %p116 = scmp.ne.s32.totalorder %s102, %s103
      %p117 = scmp.eq.s32.totalorder %s29, 5
      %p118 = por %p116, %p117
      %p120 = scmp.ne.s32.totalorder %s103, %s119
      %p121 = scmp.eq.s32.totalorder %s29, 0
      %p122 = por %p120, %p121
      %s123 = ssub.s32 %s30, %s42
      %p124 = scmp.eq.s32.totalorder %s123, 0
      %s126 = sadd.s32 %s125, 1
      %s127 = scalar_select %p124, %s125, %s126
      %p130 = pneg %p124
      %p131 = scmp.eq.s32.totalorder %s23, 5
      %p132 = por %p130, %p131
      %p133 = scmp.ne.s32.totalorder %s125, %s128
      %p134 = scmp.eq.s32.totalorder %s23, 0
      %p135 = por %p133, %p134
      %p136 = scmp.ne.s32.totalorder %s125, %s128
      %p137 = scmp.eq.s32.totalorder %s28, 5
      %p138 = por %p136, %p137
      %p139 = scmp.ne.s32.totalorder %s128, %s129
      %p140 = scmp.eq.s32.totalorder %s28, 0
      %p141 = por %p139, %p140
      %p142 = scmp.ne.s32.totalorder %s128, %s129
      %p143 = scmp.eq.s32.totalorder %s29, 5
      %p144 = por %p142, %p143
      %p146 = scmp.ne.s32.totalorder %s129, %s145
      %p147 = scmp.eq.s32.totalorder %s29, 0
      %p148 = por %p146, %p147
      %s149 = ssub.s32 %s30, %s42
      %p150 = scmp.eq.s32.totalorder %s149, 0
      %s152 = sadd.s32 %s151, 1
      %s153 = scalar_select %p150, %s151, %s152
      %p156 = pneg %p150
      %p157 = scmp.eq.s32.totalorder %s23, 5
      %p158 = por %p156, %p157
      %p159 = scmp.ne.s32.totalorder %s151, %s154
      %p160 = scmp.eq.s32.totalorder %s23, 0
      %p161 = por %p159, %p160
      %p162 = scmp.ne.s32.totalorder %s151, %s154
      %p163 = scmp.eq.s32.totalorder %s28, 5
      %p164 = por %p162, %p163
      %p165 = scmp.ne.s32.totalorder %s154, %s155
      %p166 = scmp.eq.s32.totalorder %s28, 0
      %p167 = por %p165, %p166
      %p168 = scmp.ne.s32.totalorder %s154, %s155
      %p169 = scmp.eq.s32.totalorder %s29, 5
      %p170 = por %p168, %p169
      %p172 = scmp.ne.s32.totalorder %s155, %s171
      %p173 = scmp.eq.s32.totalorder %s29, 0
      %p174 = por %p172, %p173
      %s175 = ssub.s32 %s31, %s38
      %s176 = ssub.s32 %s30, %s42
      %s177 = sor.u32 %s175, %s176
      %p178 = scmp.eq.s32.totalorder %s177, 0
      %s180 = sadd.s32 %s179, 1
      %s181 = scalar_select %p178, %s179, %s180
      %p184 = pneg %p178
      %p185 = scmp.eq.s32.totalorder %s23, 5
      %p186 = por %p184, %p185
      %p187 = scmp.ne.s32.totalorder %s179, %s182
      %p188 = scmp.eq.s32.totalorder %s23, 0
      %p189 = por %p187, %p188
      %p190 = scmp.ne.s32.totalorder %s179, %s182
      %p191 = scmp.eq.s32.totalorder %s28, 5
      %p192 = por %p190, %p191
      %p193 = scmp.ne.s32.totalorder %s182, %s183
      %p194 = scmp.eq.s32.totalorder %s28, 0
      %p195 = por %p193, %p194
      %p196 = scmp.ne.s32.totalorder %s182, %s183
      %p197 = scmp.eq.s32.totalorder %s29, 5
      %p198 = por %p196, %p197
      %p200 = scmp.ne.s32.totalorder %s183, %s199
      %p201 = scmp.eq.s32.totalorder %s29, 0
      %p202 = por %p200, %p201
      %p203 = scmp.le.s32.totalorder 1, %s23
      %p204 = scmp.lt.s32.totalorder %s23, 7
      %p205 = pnand %p203, %p204
      %p206 = pneg %p205
      // Predicated region
      $region9: #{tpu_custom_call.1} parent=5 // pred_check
        _
      $region10: #{tpu_custom_call.1} parent=5 // pred_check_branch
        %208 = sbr.rel (%p205) target = $region12
      $region11: #{tpu_custom_call.1} parent=5 // pred_region
        %s209 = ssub.s32 %s23, 1
      $region12: #{tpu_custom_call.1} parent=5 // pred_fallthru
        _
      %p210 = scmp.lt.s32.totalorder %s23, 6
      // Predicated region
      $region13: #{tpu_custom_call.1} parent=5 // pred_check
        %p211 = pneg %p210
      $region14: #{tpu_custom_call.1} parent=5 // pred_check_branch
        %213 = sbr.rel (%p211) target = $region16
      $region15: #{tpu_custom_call.1} parent=5 // pred_region
        // Predicated region
        $region17: #{tpu_custom_call.1} parent=15 // pred_check
          %p214 = pneg %p57
        $region18: #{tpu_custom_call.1} parent=15 // pred_check_branch
          %216 = sbr.rel (%p214) target = $region20
        $region19: #{tpu_custom_call.1} parent=15 // pred_region
          %s217 = sand.u32 %s47, 1
          %s218 = scalar_lea.sflag [#allocation3], %s217
          %s219 = sand.u32 %s47, 1
          %s220 = smul.addr %s219, 4
          %s221 = scalar_lea.vmem [#allocation2], %s220
          %223 = vsyncadd %s218, 0
          %s224 = smul.addr %s31, 3
          %s225 = sadd.s32 %s30, %s224
          %s226 = smul.addr %s225, 4
          %s227 = scalar_lea.hbm %s0, %s226
          %s229 = sshll.u32 %s227, 4
          %s230 = int_to_ptr.hbm [resolvable:$true] %s229
          %s231 = sshll.u32 %s221, 4
          %s232 = int_to_ptr.vmem [resolvable:$true] %s231
          %234 = dma.hbm_to_vmem [thread:$0]  %s230, 64, %s232, %s218
        $region20: #{tpu_custom_call.1} parent=15 // pred_fallthru
          _
        // Predicated region
        $region21: #{tpu_custom_call.1} parent=15 // pred_check
          %p235 = pneg %p83
        $region22: #{tpu_custom_call.1} parent=15 // pred_check_branch
          %237 = sbr.rel (%p235) target = $region24
        $region23: #{tpu_custom_call.1} parent=15 // pred_region
          %s238 = sand.u32 %s23, 1
          %s239 = scalar_lea.sflag [#allocation6], %s238
          %s240 = sand.u32 %s73, 1
          %s241 = smul.addr %s240, 64
          %s242 = scalar_lea.vmem [#allocation5], %s241
          %244 = vsyncadd %s239, 0
          %s245 = smul.addr %s30, 16
          %s246 = smul.addr %s245, 4
          %s247 = scalar_lea.hbm %s1, %s246
          %s248 = sshll.u32 %s247, 4
          %s249 = int_to_ptr.hbm [resolvable:$true] %s248
          %s250 = sshll.u32 %s242, 4
          %s251 = int_to_ptr.vmem [resolvable:$true] %s250
          %256 = dma.hbm_to_vmem [thread:$0]  %s249, 1024, %s251, %s239, 64, 64, 4
        $region24: #{tpu_custom_call.1} parent=15 // pred_fallthru
          _
        // Predicated region
        $region25: #{tpu_custom_call.1} parent=15 // pred_check
          %p257 = pneg %p109
        $region26: #{tpu_custom_call.1} parent=15 // pred_check_branch
          %259 = sbr.rel (%p257) target = $region28
        $region27: #{tpu_custom_call.1} parent=15 // pred_region
          %s260 = sand.u32 %s23, 1
          %s261 = scalar_lea.sflag [#allocation6], %s260
          %s262 = sand.u32 %s99, 1
          %s263 = scalar_lea.vmem [#allocation7], %s262
          %265 = vsyncadd %s261, 0
          %s266 = scalar_lea.hbm %s2, %s30
          %s268 = sshll.u32 %s266, 4
          %s269 = int_to_ptr.hbm [resolvable:$true] %s268
          %s270 = sshll.u32 %s263, 4
          %s271 = int_to_ptr.vmem [resolvable:$true] %s270
          %273 = dma.hbm_to_vmem [thread:$0]  %s269, 16, %s271, %s261
        $region28: #{tpu_custom_call.1} parent=15 // pred_fallthru
          _
        // Predicated region
        $region29: #{tpu_custom_call.1} parent=15 // pred_check
          %p274 = pneg %p135
        $region30: #{tpu_custom_call.1} parent=15 // pred_check_branch
          %276 = sbr.rel (%p274) target = $region32
        $region31: #{tpu_custom_call.1} parent=15 // pred_region
          %s277 = sand.u32 %s125, 1
          %s278 = scalar_lea.sflag [#allocation9], %s277
          %s279 = sand.u32 %s125, 1
          %s280 = smul.addr %s279, 64
          %s281 = scalar_lea.vmem [#allocation8], %s280
          %283 = vsyncadd %s278, 0
          %s284 = smul.addr %s30, 16
          %s285 = smul.addr %s284, 4
          %s286 = scalar_lea.hbm %s3, %s285
          %s287 = sshll.u32 %s286, 4
          %s288 = int_to_ptr.hbm [resolvable:$true] %s287
          %s289 = sshll.u32 %s281, 4
          %s290 = int_to_ptr.vmem [resolvable:$true] %s289
          %295 = dma.hbm_to_vmem [thread:$0]  %s288, 1024, %s290, %s278, 64, 64, 4
        $region32: #{tpu_custom_call.1} parent=15 // pred_fallthru
          _
        // Predicated region
        $region33: #{tpu_custom_call.1} parent=15 // pred_check
          %p296 = pneg %p161
        $region34: #{tpu_custom_call.1} parent=15 // pred_check_branch
          %298 = sbr.rel (%p296) target = $region36
        $region35: #{tpu_custom_call.1} parent=15 // pred_region
          %p299 = scmp.lt.s32.totalorder %s30, 2
          %s300 = scalar_select %p299, %s30, 2
          %s301 = scalar_lea.vmem %s4, %s300
        $region36: #{tpu_custom_call.1} parent=15 // pred_fallthru
          _
      $region16: #{tpu_custom_call.1} parent=5 // pred_fallthru
        _
      %p302 = scmp.le.s32.totalorder 1, %s23
      %p303 = scmp.lt.s32.totalorder %s23, 7
      %p304 = pnand %p302, %p303
      %p305 = pneg %p304
      // Predicated region
      $region37: #{tpu_custom_call.1} parent=5 // pred_check
        _
      $region38: #{tpu_custom_call.1} parent=5 // pred_check_branch
        %307 = sbr.rel (%p304) target = $region40
      $region39: #{tpu_custom_call.1} parent=5 // pred_region
        %s308 = ssub.s32 %s23, 1
        %s309 = sand.u32 %s50, 1
        %s310 = scalar_lea.sflag [#allocation3], %s309
        %s311 = sand.u32 %s50, 1
        %s312 = smul.addr %s311, 4
        %s313 = scalar_lea.vmem [#allocation2], %s312
        // Predicated region
        $region41: #{tpu_custom_call.1} parent=39 // pred_check
          %p314 = pneg %p63
        $region42: #{tpu_custom_call.1} parent=39 // pred_check_branch
          %316 = sbr.rel (%p314) target = $region44
        $region43: #{tpu_custom_call.1} parent=39 // pred_region
          %318 = dma.done %s310, 64
        $region44: #{tpu_custom_call.1} parent=39 // pred_fallthru
          _
        %s319 = sand.u32 %s28, 1
        %s320 = scalar_lea.sflag [#allocation6], %s319
        %s321 = sand.u32 %s76, 1
        %s322 = smul.addr %s321, 64
        %s323 = scalar_lea.vmem [#allocation5], %s322
        // Predicated region
        $region45: #{tpu_custom_call.1} parent=39 // pred_check
          %p324 = pneg %p89
        $region46: #{tpu_custom_call.1} parent=39 // pred_check_branch
          %326 = sbr.rel (%p324) target = $region48
        $region47: #{tpu_custom_call.1} parent=39 // pred_region
          %328 = dma.done %s320, 1024
        $region48: #{tpu_custom_call.1} parent=39 // pred_fallthru
          _
        %s329 = sand.u32 %s28, 1
        %s330 = scalar_lea.sflag [#allocation6], %s329
        %s331 = sand.u32 %s102, 1
        %s332 = scalar_lea.vmem [#allocation7], %s331
        // Predicated region
        $region49: #{tpu_custom_call.1} parent=39 // pred_check
          %p333 = pneg %p115
        $region50: #{tpu_custom_call.1} parent=39 // pred_check_branch
          %335 = sbr.rel (%p333) target = $region52
        $region51: #{tpu_custom_call.1} parent=39 // pred_region
          %337 = dma.done %s330, 16
        $region52: #{tpu_custom_call.1} parent=39 // pred_fallthru
          _
        %s338 = sand.u32 %s128, 1
        %s339 = scalar_lea.sflag [#allocation9], %s338
        %s340 = sand.u32 %s128, 1
        %s341 = smul.addr %s340, 64
        %s342 = scalar_lea.vmem [#allocation8], %s341
        // Predicated region
        $region53: #{tpu_custom_call.1} parent=39 // pred_check
          %p343 = pneg %p141
        $region54: #{tpu_custom_call.1} parent=39 // pred_check_branch
          %345 = sbr.rel (%p343) target = $region56
        $region55: #{tpu_custom_call.1} parent=39 // pred_region
          %347 = dma.done %s339, 1024
        $region56: #{tpu_custom_call.1} parent=39 // pred_fallthru
          _
        %s348 = sand.u32 %s50, 1
        %s349 = scalar_lea.sflag [#allocation3], %s348
        %s350 = sand.u32 %s50, 1
        %s351 = smul.addr %s350, 4
        %s352 = scalar_lea.vmem [#allocation2], %s351
        %p353 = pneg %p63
        %p354 = pneg %p60
        %s355 = sand.u32 %s28, 1
        %s356 = scalar_lea.sflag [#allocation6], %s355
        %s357 = sand.u32 %s76, 1
        %s358 = smul.addr %s357, 64
        %s359 = scalar_lea.vmem [#allocation5], %s358
        %p360 = pneg %p89
        %p361 = pneg %p86
        %s362 = sand.u32 %s28, 1
        %s363 = scalar_lea.sflag [#allocation6], %s362
        %s364 = sand.u32 %s102, 1
        %s365 = scalar_lea.vmem [#allocation7], %s364
        %p366 = pneg %p115
        %p367 = pneg %p112
        %s368 = sand.u32 %s128, 1
        %s369 = scalar_lea.sflag [#allocation9], %s368
        %s370 = sand.u32 %s128, 1
        %s371 = smul.addr %s370, 64
        %s372 = scalar_lea.vmem [#allocation8], %s371
        %p373 = pneg %p141
        %p374 = pneg %p138
        %p375 = scmp.lt.s32.totalorder %s32, 2
        %s376 = scalar_select %p375, %s32, 2
        %s377 = scalar_lea.vmem %s4, %s376
        %p378 = pneg %p167
        %p379 = pneg %p164
        %p380 = pneg %p195
        %p381 = pneg %p192
        %s382 = sand.u32 %s182, 1
        %s383 = scalar_lea.sflag [#allocation4], %s382
        %s384 = sand.u32 %s182, 1
        %s385 = smul.addr %s384, 8
        %s386 = scalar_lea.vmem [#allocation10], %s385
        %p387 = scmp.lt.s32.totalorder %s32, 2
        %s388 = scalar_select %p387, %s32, 2
        %s389 = scalar_lea.vmem %s4, %s388
        %v390 = vld [vmem:[%s313] sm:$0xf]
        %v391 = vld [vmem:[%s323] sm:$0xf]
        %v392 = vld [vmem:[%s323 + $0x4] sm:$0xf]
        %v393 = vld [vmem:[%s323 + $0x8] sm:$0xf]
        %v394 = vld [vmem:[%s323 + $0xc] sm:$0xf]
        %v395 = vld [vmem:[%s323 + $0x10] sm:$0xf]
        %v396 = vld [vmem:[%s323 + $0x14] sm:$0xf]
        %v397 = vld [vmem:[%s323 + $0x18] sm:$0xf]
        %v398 = vld [vmem:[%s323 + $0x1c] sm:$0xf]
        %v399 = vld [vmem:[%s323 + $0x20] sm:$0xf]
        %v400 = vld [vmem:[%s323 + $0x24] sm:$0xf]
        %v401 = vld [vmem:[%s323 + $0x28] sm:$0xf]
        %v402 = vld [vmem:[%s323 + $0x2c] sm:$0xf]
        %v403 = vld [vmem:[%s323 + $0x30] sm:$0xf]
        %v404 = vld [vmem:[%s323 + $0x34] sm:$0xf]
        %v405 = vld [vmem:[%s323 + $0x38] sm:$0xf]
        %v406 = vld [vmem:[%s323 + $0x3c] sm:$0xf]
        %v407 = vld [vmem:[%s342] sm:$0xf]
        %v408 = vld [vmem:[%s342 + $0x4] sm:$0xf]
        %v409 = vld [vmem:[%s342 + $0x8] sm:$0xf]
        %v410 = vld [vmem:[%s342 + $0xc] sm:$0xf]
        %v411 = vld [vmem:[%s342 + $0x10] sm:$0xf]
        %v412 = vld [vmem:[%s342 + $0x14] sm:$0xf]
        %v413 = vld [vmem:[%s342 + $0x18] sm:$0xf]
        %v414 = vld [vmem:[%s342 + $0x1c] sm:$0xf]
        %v415 = vld [vmem:[%s342 + $0x20] sm:$0xf]
        %v416 = vld [vmem:[%s342 + $0x24] sm:$0xf]
        %v417 = vld [vmem:[%s342 + $0x28] sm:$0xf]
        %v418 = vld [vmem:[%s342 + $0x2c] sm:$0xf]
        %v419 = vld [vmem:[%s342 + $0x30] sm:$0xf]
        %v420 = vld [vmem:[%s342 + $0x34] sm:$0xf]
        %v421 = vld [vmem:[%s342 + $0x38] sm:$0xf]
        %v422 = vld [vmem:[%s342 + $0x3c] sm:$0xf]
        %v423 = vld [vmem:[%s332] sm:$0x1]
        %v425 = vperm.slane %v423, 0
        %v443 = vunpack.c.l.b16 %v391
        %v444 = vunpack.c.l.b16 %v392
        %v445 = vunpack.c.l.b16 %v393
        %v446 = vunpack.c.l.b16 %v394
        %v447 = vunpack.c.l.b16 %v395
        %v448 = vunpack.c.l.b16 %v396
        %v449 = vunpack.c.l.b16 %v397
        %v450 = vunpack.c.l.b16 %v398
        %v451 = vunpack.c.l.b16 %v399
        %v452 = vunpack.c.l.b16 %v400
        %v453 = vunpack.c.l.b16 %v401
        %v454 = vunpack.c.l.b16 %v402
        %v455 = vunpack.c.l.b16 %v403
        %v456 = vunpack.c.l.b16 %v404
        %v457 = vunpack.c.l.b16 %v405
        %v458 = vunpack.c.l.b16 %v406
        %v459 = vpack.c.b16 %v444, %v443
        %v460 = vpack.c.b16 %v446, %v445
        %v461 = vpack.c.b16 %v448, %v447
        %v462 = vpack.c.b16 %v450, %v449
        %v463 = vpack.c.b16 %v452, %v451
        %v464 = vpack.c.b16 %v454, %v453
        %v465 = vpack.c.b16 %v456, %v455
        %v466 = vpack.c.b16 %v458, %v457
        %475 = vmatpush.bf16.msra.mxu0 %v466
        %476 = vmatpush.bf16.msra.mxu0 %v465
        %477 = vmatpush.bf16.msra.mxu0 %v464
        %478 = vmatpush.bf16.msra.mxu0 %v463
        %479 = vmatpush.bf16.msra.mxu0 %v462
        %480 = vmatpush.bf16.msra.mxu0 %v461
        %481 = vmatpush.bf16.msra.mxu0 %v460
        %482 = vmatpush.bf16.msra.mxu0 %v459
        %483 = vmatmul.bf16.gmra.mxu0 %v390
        %v484 = vpop.f32.mrf.mxu0
        %v485 = vadd.f32 %v425, %v484
        %v486 = vpop.f32.mrf.mxu0
        %487 = vdwg.mxu0
        %v488 = vmax.f32 %v485, 0.0
        %v489 = vpack.c.bf16 %v488, %v488
        %v490 = vld [vmem:[%s389] sm:$0x1]
        %v492 = vperm.slane %v490, 0
        %v510 = vunpack.c.l.b16 %v407
        %v511 = vunpack.c.l.b16 %v408
        %v512 = vunpack.c.l.b16 %v409
        %v513 = vunpack.c.l.b16 %v410
        %v514 = vunpack.c.l.b16 %v411
        %v515 = vunpack.c.l.b16 %v412
        %v516 = vunpack.c.l.b16 %v413
        %v517 = vunpack.c.l.b16 %v414
        %v518 = vunpack.c.l.b16 %v415
        %v519 = vunpack.c.l.b16 %v416
        %v520 = vunpack.c.l.b16 %v417
        %v521 = vunpack.c.l.b16 %v418
        %v522 = vunpack.c.l.b16 %v419
        %v523 = vunpack.c.l.b16 %v420
        %v524 = vunpack.c.l.b16 %v421
        %v525 = vunpack.c.l.b16 %v422
        %v526 = vpack.c.b16 %v511, %v510
        %v527 = vpack.c.b16 %v513, %v512
        %v528 = vpack.c.b16 %v515, %v514
        %v529 = vpack.c.b16 %v517, %v516
        %v530 = vpack.c.b16 %v519, %v518
        %v531 = vpack.c.b16 %v521, %v520
        %v532 = vpack.c.b16 %v523, %v522
        %v533 = vpack.c.b16 %v525, %v524
        %542 = vmatpush.bf16.msra.mxu0 %v533
        %543 = vmatpush.bf16.msra.mxu0 %v532
        %544 = vmatpush.bf16.msra.mxu0 %v531
        %545 = vmatpush.bf16.msra.mxu0 %v530
        %546 = vmatpush.bf16.msra.mxu0 %v529
        %547 = vmatpush.bf16.msra.mxu0 %v528
        %548 = vmatpush.bf16.msra.mxu0 %v527
        %549 = vmatpush.bf16.msra.mxu0 %v526
        %550 = vmatmul.bf16.gmra.mxu0 %v489
        %v551 = vpop.f32.mrf.mxu0
        %v552 = vadd.f32 %v492, %v551
        %v553 = vpop.f32.mrf.mxu0
        %554 = vdwg.mxu0
        %555 = vst [vmem:[%s386] sm:$0xff] %v552
        %s556 = sand.u32 %s182, 1
        %s557 = scalar_lea.sflag [#allocation4], %s556
        %s558 = sand.u32 %s182, 1
        %s559 = smul.addr %s558, 8
        %s560 = scalar_lea.vmem [#allocation10], %s559
        // Predicated region
        $region57: #{tpu_custom_call.1} parent=39 // pred_check
          %p561 = pneg %p192
        $region58: #{tpu_custom_call.1} parent=39 // pred_check_branch
          %563 = sbr.rel (%p561) target = $region60
        $region59: #{tpu_custom_call.1} parent=39 // pred_region
          %565 = vsyncadd %s557, 0
          %s566 = smul.addr %s33, 3
          %s567 = sadd.s32 %s32, %s566
          %s568 = smul.addr %s567, 8
          %s569 = scalar_lea.hbm %s5, %s568
          %s571 = sshll.u32 %s560, 4
          %s572 = int_to_ptr.vmem [resolvable:$true] %s571
          %s573 = sshll.u32 %s569, 4
          %s574 = int_to_ptr.hbm [resolvable:$true] %s573
          %576 = dma.vmem_to_hbm [thread:$0]  %s572, 128, %s574, %s557
        $region60: #{tpu_custom_call.1} parent=39 // pred_fallthru
          _
      $region40: #{tpu_custom_call.1} parent=5 // pred_fallthru
        _
      %p577 = scmp.le.s32.totalorder 2, %s23
      // Predicated region
      $region61: #{tpu_custom_call.1} parent=5 // pred_check
        %p578 = pneg %p577
      $region62: #{tpu_custom_call.1} parent=5 // pred_check_branch
        %580 = sbr.rel (%p578) target = $region64
      $region63: #{tpu_custom_call.1} parent=5 // pred_region
        %s581 = ssub.s32 %s23, 2
        // Predicated region
        $region65: #{tpu_custom_call.1} parent=63 // pred_check
          %p582 = pneg %p198
        $region66: #{tpu_custom_call.1} parent=63 // pred_check_branch
          %584 = sbr.rel (%p582) target = $region68
        $region67: #{tpu_custom_call.1} parent=63 // pred_region
          %s585 = sand.u32 %s183, 1
          %s586 = scalar_lea.sflag [#allocation4], %s585
          %s587 = sand.u32 %s183, 1
          %s588 = smul.addr %s587, 8
          %s589 = scalar_lea.vmem [#allocation10], %s588
          %591 = dma.done %s586, 128
        $region68: #{tpu_custom_call.1} parent=63 // pred_fallthru
          _
      $region64: #{tpu_custom_call.1} parent=5 // pred_fallthru
        _
    $region6: #{tpu_custom_call.1} parent=1 // loop_footer
      %s27 = sadd.s32 1, %s23
    $region7: #{tpu_custom_call.1} parent=1 // loop_footer_branch
      %22 = sbr.rel target = $region3
    $region8: #{tpu_custom_call.1} parent=1 // loop_exit
      _
    %592 = vsyncpa [#allocation3], 1
    %s593 = scalar_lea.sflag [#allocation3], 1
    %594 = vsyncpa %s593, 1
    %595 = vsyncpa [#allocation6], 1
    %s596 = scalar_lea.sflag [#allocation6], 1
    %597 = vsyncpa %s596, 1
    %598 = vsyncpa [#allocation9], 1
    %s599 = scalar_lea.sflag [#allocation9], 1
    %600 = vsyncpa %s599, 1
    %601 = vsyncpa [#allocation4], 1
    %s602 = scalar_lea.sflag [#allocation4], 1
    %603 = vsyncpa %s602, 1

</llo_original>
